<compile_context>
chip_gen: v7x
topology: tpu7x:2x2x1
jax: 0.10.0
libtpu: 0.0.40
codegen_flags: <defaults>
</compile_context>

<pallas_src>
import math
import functools

import jax
import jax.numpy as jnp
from jax.experimental import pallas as pl
from jax.experimental.pallas import tpu as pltpu

NEG_INF = -1e10   # same NEG_INF constant as the torch reference
EPSILON = 1e-10   # same per-KV-block epsilon as the torch reference


def _flash_kernel(q_ref, k_ref, v_ref, o_ref, m_sc, l_sc, acc_sc, q_sc, *, scale):
    """One (batch*head, q_block) tile; grid axis 2 iterates KV blocks."""
    j = pl.program_id(2)

    @pl.when(j == 0)
    def _init():
        m_sc[...] = jnp.full_like(m_sc, NEG_INF)
        l_sc[...] = jnp.zeros_like(l_sc)
        acc_sc[...] = jnp.zeros_like(acc_sc)
        # The Q tile is resident across the whole KV axis (its block index does
        # not depend on j), so apply the softmax scale exactly once.
        q_sc[...] = q_ref[...] * scale

    q = q_sc[...]                 # (tq, E), input dtype (bf16 stays bf16)
    k = k_ref[...]                # (tkv, E)
    v = v_ref[...]                # (tkv, E)

    # S_ij = (Q*scale) @ K^T — contract the last dims directly on the MXU,
    # no explicit transpose of K, f32 accumulation.
    s = jax.lax.dot_general(
        q, k,
        dimension_numbers=(((1,), (1,)), ((), ())),
        preferred_element_type=jnp.float32)               # (tq, tkv) f32

    m_prev = m_sc[...]                                    # (tq, 1)
    m_blk = jnp.max(s, axis=-1, keepdims=True)            # (tq, 1)
    m_new = jnp.maximum(m_prev, m_blk)

    p = jnp.exp(s - m_new)                                # (tq, tkv) f32
    alpha = jnp.exp(m_prev - m_new)                       # (tq, 1)

    # Unnormalized accumulator: acc = softmax-numerator @ V, l = denominator.
    l_sc[...] = alpha * l_sc[...] + (jnp.sum(p, axis=-1, keepdims=True) + EPSILON)
    acc_sc[...] = alpha * acc_sc[...] + jnp.dot(
        p.astype(v.dtype), v, preferred_element_type=jnp.float32)
    m_sc[...] = m_new

    @pl.when(j == pl.num_programs(2) - 1)
    def _finalize():
        inv_l = pl.reciprocal(l_sc[...], approx=True)     # EUP, essentially free
        o_ref[...] = (acc_sc[...] * inv_l).astype(o_ref.dtype)


def flash_attention_forward(queries, keys, values, attn_mask=None,
                            block_q=128, block_kv=256):
    """Mirrors FlashAttention.forward: inputs (B, L, H, E) -> (output, None)."""
    # TODO(synk): masked path of the torch reference uses an unimported
    # `rearrange` (it would crash there too); only the mask=None path is implemented.
    assert attn_mask is None

    B, L, H, E = queries.shape
    tq = min(block_q, L)
    tkv = min(block_kv, L)
    assert L % tq == 0 and L % tkv == 0, "seq len must tile evenly for this demo"
    assert tq % 8 == 0 and tkv % 8 == 0, "tiles must be sublane aligned"

    scale = 1.0 / math.sqrt(E)

    # (B, L, H, E) -> (B, H, L, E) -> (B*H, L, E)
    def to_bhle(x):
        return jnp.transpose(x, (0, 2, 1, 3)).reshape(B * H, L, E)

    q = to_bhle(queries)
    k = to_bhle(keys)
    v = to_bhle(values)

    grid = (B * H, L // tq, L // tkv)

    itemsize = jnp.dtype(queries.dtype).itemsize
    cost = pl.CostEstimate(
        flops=4 * B * H * L * L * E,                 # QK^T + P@V
        transcendentals=B * H * L * L,               # exp on every score
        bytes_accessed=(q.size + k.size + v.size + B * H * L * E) * itemsize,
    )

    # TODO(synk): for production shapes with E < 128, pack several heads along
    # the last output dim (lane-dense stores); with E = 32 the output store is
    # a masked partial store.
    out = pl.pallas_call(
        functools.partial(_flash_kernel, scale=scale),
        out_shape=jax.ShapeDtypeStruct((B * H, L, E), queries.dtype),
        grid_spec=pltpu.PrefetchScalarGridSpec(
            num_scalar_prefetch=0,
            grid=grid,
            in_specs=[
                # Leading size-1 batch*head dim is squeezed -> 2-D kernel refs.
                pl.BlockSpec((None, tq, E), lambda bh, i, j: (bh, i, 0)),
                pl.BlockSpec((None, tkv, E), lambda bh, i, j: (bh, j, 0)),
                pl.BlockSpec((None, tkv, E), lambda bh, i, j: (bh, j, 0)),
            ],
            out_specs=pl.BlockSpec((None, tq, E), lambda bh, i, j: (bh, i, 0)),
            scratch_shapes=[
                pltpu.VMEM((tq, 1), jnp.float32),          # running max m
                pltpu.VMEM((tq, 1), jnp.float32),          # running denom l
                pltpu.VMEM((tq, E), jnp.float32),          # unnormalized acc
                pltpu.VMEM((tq, E), queries.dtype),        # scaled Q tile
            ],
        ),
        compiler_params=pltpu.CompilerParams(
            dimension_semantics=("parallel", "parallel", "arbitrary"),
            # Working set (Q + double-buffered K/V tiles + f32 acc) is small;
            # 32 MiB is the scoped default and fits v7x's 64 MiB VMEM with room.
            vmem_limit_bytes=32 * 1024 * 1024,
        ),
        cost_estimate=cost,
    )(q, k, v)

    # (B*H, L, E) -> (B, H, L, E) -> (B, L, H, E)
    res = jnp.transpose(out.reshape(B, H, L, E), (0, 2, 1, 3))
    return res, None


def _reference(queries, keys, values):
    """Plain-JAX softmax attention for a correctness check."""
    B, L, H, E = queries.shape
    q = jnp.transpose(queries, (0, 2, 1, 3))
    k = jnp.transpose(keys, (0, 2, 1, 3))
    v = jnp.transpose(values, (0, 2, 1, 3))
    s = jnp.einsum("bhid,bhjd->bhij", q, k) / math.sqrt(E)
    p = jax.nn.softmax(s, axis=-1)
    o = jnp.einsum("bhij,bhjd->bhid", p, v)
    return jnp.transpose(o, (0, 2, 1, 3))


if __name__ == "__main__":
    key = jax.random.PRNGKey(0)
    kq, kk, kv = jax.random.split(key, 3)

    B, L, H, E = 2, 64, 4, 32   # small shapes; tiles clamp to tq=tkv=64
    queries = jax.random.normal(kq, (B, L, H, E), dtype=jnp.float32)
    keys = jax.random.normal(kk, (B, L, H, E), dtype=jnp.float32)
    values = jax.random.normal(kv, (B, L, H, E), dtype=jnp.float32)

    out, attn = flash_attention_forward(queries, keys, values, attn_mask=None)
    out = jax.block_until_ready(out)

    ref = _reference(queries, keys, values)
    assert out.shape == (B, L, H, E)
    # Slightly looser tolerance than before: finalize uses the EUP approximate
    # reciprocal (relative error ~2^-12).
    assert jnp.allclose(out, ref, atol=2e-3, rtol=2e-3), "mismatch vs reference"

    print("KERNEL_OK")
</pallas_src>

<mosaic_0001>
module attributes {stable_mosaic.version = 11 : i64} {
  func.func @_flash_kernel(%arg0: i32, %arg1: i32, %arg2: i32, %arg3: memref<1x64x32xf32, #tpu.memory_space<vmem>>, %arg4: memref<1x64x32xf32, #tpu.memory_space<vmem>>, %arg5: memref<1x64x32xf32, #tpu.memory_space<vmem>>, %arg6: memref<1x64x32xf32, #tpu.memory_space<vmem>>, %arg7: memref<64x1xf32, #tpu.memory_space<vmem>>, %arg8: memref<64x1xf32, #tpu.memory_space<vmem>>, %arg9: memref<64x32xf32, #tpu.memory_space<vmem>>, %arg10: memref<64x32xf32, #tpu.memory_space<vmem>>) attributes {dimension_semantics = [#tpu.dimension_semantics<parallel>, #tpu.dimension_semantics<parallel>, #tpu.dimension_semantics<arbitrary>], iteration_bounds = array<i64: 8, 1, 1>, scalar_prefetch = 0 : i64, scratch_operands = 4 : i64, tpu.core_type = #tpu.core_type<tc>, window_params = [{transform_indices = @transform_0, window_bounds = array<i64: 1, 64, 32>}, {transform_indices = @transform_1, window_bounds = array<i64: 1, 64, 32>}, {transform_indices = @transform_2, window_bounds = array<i64: 1, 64, 32>}, {transform_indices = @transform_3, window_bounds = array<i64: 1, 64, 32>}]} {
    %c0_i32 = arith.constant 0 : i32
    %0 = arith.cmpi eq, %arg2, %c0_i32 : i32
    %1 = arith.extui %0 : i1 to i32
    %c0_i32_0 = arith.constant 0 : i32
    %2 = arith.cmpi ne, %1, %c0_i32_0 : i32
    scf.if %2 {
      %cst_26 = arith.constant -1.000000e+10 : f32
      %36 = vector.broadcast %cst_26 : f32 to vector<64x1xf32>
      %c0_27 = arith.constant 0 : index
      %c0_28 = arith.constant 0 : index
      %37 = vector.load %arg7[%c0_27, %c0_28] : memref<64x1xf32, #tpu.memory_space<vmem>>, vector<64x1xf32>
      tpu.vector_store %arg7[%c0_27, %c0_28], %36 {strides = array<i32>} : memref<64x1xf32, #tpu.memory_space<vmem>>, vector<64x1xf32>,
      %cst_29 = arith.constant 0.000000e+00 : f32
      %38 = vector.broadcast %cst_29 : f32 to vector<64x1xf32>
      %c0_30 = arith.constant 0 : index
      %c0_31 = arith.constant 0 : index
      %39 = vector.load %arg8[%c0_30, %c0_31] : memref<64x1xf32, #tpu.memory_space<vmem>>, vector<64x1xf32>
      tpu.vector_store %arg8[%c0_30, %c0_31], %38 {strides = array<i32>} : memref<64x1xf32, #tpu.memory_space<vmem>>, vector<64x1xf32>,
      %cst_32 = arith.constant 0.000000e+00 : f32
      %40 = vector.broadcast %cst_32 : f32 to vector<64x32xf32>
      %c0_33 = arith.constant 0 : index
      %c0_34 = arith.constant 0 : index
      %41 = vector.load %arg9[%c0_33, %c0_34] : memref<64x32xf32, #tpu.memory_space<vmem>>, vector<64x32xf32>
      tpu.vector_store %arg9[%c0_33, %c0_34], %40 {strides = array<i32>} : memref<64x32xf32, #tpu.memory_space<vmem>>, vector<64x32xf32>,
      %c0_35 = arith.constant 0 : index
      %c0_36 = arith.constant 0 : index
      %c0_37 = arith.constant 0 : index
      %42 = vector.load %arg3[%c0_35, %c0_36, %c0_37] : memref<1x64x32xf32, #tpu.memory_space<vmem>>, vector<1x64x32xf32>
      %43 = vector.shape_cast %42 : vector<1x64x32xf32> to vector<64x32xf32>
      %cst_38 = arith.constant 0.176776692 : f32
      %44 = vector.broadcast %cst_38 : f32 to vector<64x32xf32>
      %45 = arith.mulf %43, %44 : vector<64x32xf32>
      %c0_39 = arith.constant 0 : index
      %c0_40 = arith.constant 0 : index
      %46 = vector.load %arg10[%c0_39, %c0_40] : memref<64x32xf32, #tpu.memory_space<vmem>>, vector<64x32xf32>
      tpu.vector_store %arg10[%c0_39, %c0_40], %45 {strides = array<i32>} : memref<64x32xf32, #tpu.memory_space<vmem>>, vector<64x32xf32>,
    } else {
    }
    %c0 = arith.constant 0 : index
    %c0_1 = arith.constant 0 : index
    %3 = vector.load %arg10[%c0, %c0_1] : memref<64x32xf32, #tpu.memory_space<vmem>>, vector<64x32xf32>
    %c0_2 = arith.constant 0 : index
    %c0_3 = arith.constant 0 : index
    %c0_4 = arith.constant 0 : index
    %4 = vector.load %arg4[%c0_2, %c0_3, %c0_4] : memref<1x64x32xf32, #tpu.memory_space<vmem>>, vector<1x64x32xf32>
    %5 = vector.shape_cast %4 : vector<1x64x32xf32> to vector<64x32xf32>
    %c0_5 = arith.constant 0 : index
    %c0_6 = arith.constant 0 : index
    %c0_7 = arith.constant 0 : index
    %6 = vector.load %arg5[%c0_5, %c0_6, %c0_7] : memref<1x64x32xf32, #tpu.memory_space<vmem>>, vector<1x64x32xf32>
    %7 = vector.shape_cast %6 : vector<1x64x32xf32> to vector<64x32xf32>
    %cst = arith.constant dense<0.000000e+00> : vector<64x64xf32>
    %8 = tpu.matmul %3, %5, %cst {dimension_numbers = #tpu.dot_dimension_numbers<[1], [1], [0], [0], [0, 0, 1, 0], [], []>} : vector<64x32xf32>, vector<64x32xf32>, vector<64x64xf32> -> vector<64x64xf32>
    %c0_8 = arith.constant 0 : index
    %c0_9 = arith.constant 0 : index
    %9 = vector.load %arg7[%c0_8, %c0_9] : memref<64x1xf32, #tpu.memory_space<vmem>>, vector<64x1xf32>
    %cst_10 = arith.constant dense<0xFF800000> : vector<64xf32>
    %10 = vector.multi_reduction <maximumf>, %8, %cst_10 [1] : vector<64x64xf32> to vector<64xf32>
    %11 = vector.shape_cast %10 : vector<64xf32> to vector<64x1xf32>
    %12 = arith.maximumf %9, %11 : vector<64x1xf32>
    %13 = vector.broadcast %12 : vector<64x1xf32> to vector<64x64xf32>
    %14 = arith.subf %8, %13 : vector<64x64xf32>
    %15 = math.exp %14 : vector<64x64xf32>
    %16 = arith.subf %9, %12 : vector<64x1xf32>
    %17 = math.exp %16 : vector<64x1xf32>
    %c0_11 = arith.constant 0 : index
    %c0_12 = arith.constant 0 : index
    %18 = vector.load %arg8[%c0_11, %c0_12] : memref<64x1xf32, #tpu.memory_space<vmem>>, vector<64x1xf32>
    %19 = arith.mulf %17, %18 : vector<64x1xf32>
    %cst_13 = arith.constant dense<0.000000e+00> : vector<64xf32>
    %20 = vector.multi_reduction <add>, %15, %cst_13 [1] : vector<64x64xf32> to vector<64xf32>
    %21 = vector.shape_cast %20 : vector<64xf32> to vector<64x1xf32>
    %cst_14 = arith.constant 1.000000e-10 : f32
    %22 = vector.broadcast %cst_14 : f32 to vector<64x1xf32>
    %23 = arith.addf %21, %22 : vector<64x1xf32>
    %24 = arith.addf %19, %23 : vector<64x1xf32>
    %c0_15 = arith.constant 0 : index
    %c0_16 = arith.constant 0 : index
    %25 = vector.load %arg8[%c0_15, %c0_16] : memref<64x1xf32, #tpu.memory_space<vmem>>, vector<64x1xf32>
    tpu.vector_store %arg8[%c0_15, %c0_16], %24 {strides = array<i32>} : memref<64x1xf32, #tpu.memory_space<vmem>>, vector<64x1xf32>,
    %c0_17 = arith.constant 0 : index
    %c0_18 = arith.constant 0 : index
    %26 = vector.load %arg9[%c0_17, %c0_18] : memref<64x32xf32, #tpu.memory_space<vmem>>, vector<64x32xf32>
    %27 = vector.broadcast %17 : vector<64x1xf32> to vector<64x32xf32>
    %28 = arith.mulf %27, %26 : vector<64x32xf32>
    %cst_19 = arith.constant dense<0.000000e+00> : vector<64x32xf32>
    %29 = tpu.matmul %15, %7, %cst_19 {dimension_numbers = #tpu.dot_dimension_numbers<[1], [0], [0], [1], [0, 0, 1, 1], [], []>} : vector<64x64xf32>, vector<64x32xf32>, vector<64x32xf32> -> vector<64x32xf32>
    %30 = arith.addf %28, %29 : vector<64x32xf32>
    %c0_20 = arith.constant 0 : index
    %c0_21 = arith.constant 0 : index
    %31 = vector.load %arg9[%c0_20, %c0_21] : memref<64x32xf32, #tpu.memory_space<vmem>>, vector<64x32xf32>
    tpu.vector_store %arg9[%c0_20, %c0_21], %30 {strides = array<i32>} : memref<64x32xf32, #tpu.memory_space<vmem>>, vector<64x32xf32>,
    %c0_22 = arith.constant 0 : index
    %c0_23 = arith.constant 0 : index
    %32 = vector.load %arg7[%c0_22, %c0_23] : memref<64x1xf32, #tpu.memory_space<vmem>>, vector<64x1xf32>
    tpu.vector_store %arg7[%c0_22, %c0_23], %12 {strides = array<i32>} : memref<64x1xf32, #tpu.memory_space<vmem>>, vector<64x1xf32>,
    %c0_i32_24 = arith.constant 0 : i32
    %33 = arith.cmpi eq, %arg2, %c0_i32_24 : i32
    %34 = arith.extui %33 : i1 to i32
    %c0_i32_25 = arith.constant 0 : i32
    %35 = arith.cmpi ne, %34, %c0_i32_25 : i32
    scf.if %35 {
      %c0_26 = arith.constant 0 : index
      %c0_27 = arith.constant 0 : index
      %36 = vector.load %arg8[%c0_26, %c0_27] : memref<64x1xf32, #tpu.memory_space<vmem>>, vector<64x1xf32>
      %37 = tpu.reciprocal %36 {approx = true} : vector<64x1xf32> -> vector<64x1xf32>
      %c0_28 = arith.constant 0 : index
      %c0_29 = arith.constant 0 : index
      %38 = vector.load %arg9[%c0_28, %c0_29] : memref<64x32xf32, #tpu.memory_space<vmem>>, vector<64x32xf32>
      %39 = vector.broadcast %37 : vector<64x1xf32> to vector<64x32xf32>
      %40 = arith.mulf %38, %39 : vector<64x32xf32>
      %c0_30 = arith.constant 0 : index
      %c0_31 = arith.constant 0 : index
      %c0_32 = arith.constant 0 : index
      %41 = vector.load %arg6[%c0_30, %c0_31, %c0_32] : memref<1x64x32xf32, #tpu.memory_space<vmem>>, vector<1x64x32xf32>
      %42 = vector.shape_cast %41 : vector<1x64x32xf32> to vector<64x32xf32>
      %43 = vector.shape_cast %40 : vector<64x32xf32> to vector<1x64x32xf32>
      tpu.vector_store %arg6[%c0_30, %c0_31, %c0_32], %43 {strides = array<i32>} : memref<1x64x32xf32, #tpu.memory_space<vmem>>, vector<1x64x32xf32>,
    } else {
    }
    return
  }
  func.func @transform_0(%arg0: i32, %arg1: i32, %arg2: i32) -> (i32, i32, i32) {
    %c0_i32 = arith.constant 0 : i32
    %c0_i32_0 = arith.constant 0 : i32
    return %arg0, %arg1, %c0_i32 : i32, i32, i32
  }
  func.func @transform_1(%arg0: i32, %arg1: i32, %arg2: i32) -> (i32, i32, i32) {
    %c0_i32 = arith.constant 0 : i32
    %c0_i32_0 = arith.constant 0 : i32
    return %arg0, %arg2, %c0_i32 : i32, i32, i32
  }
  func.func @transform_2(%arg0: i32, %arg1: i32, %arg2: i32) -> (i32, i32, i32) {
    %c0_i32 = arith.constant 0 : i32
    %c0_i32_0 = arith.constant 0 : i32
    return %arg0, %arg2, %c0_i32 : i32, i32, i32
  }
  func.func @transform_3(%arg0: i32, %arg1: i32, %arg2: i32) -> (i32, i32, i32) {
    %c0_i32 = arith.constant 0 : i32
    %c0_i32_0 = arith.constant 0 : i32
    return %arg0, %arg1, %c0_i32 : i32, i32, i32
  }
}

</mosaic_0001>

<llo_original>
// kernel: tpu_custom_call.1
$region0: #{tpu_custom_call.1}
  #allocation0 [shape = 'u32[]', space=smem, size = 0x4, offset = 0x4, fixed_abs, tag = 'smem constant byte address 0x4 - core index']
  #allocation1 [shape = 'u32[144,128]{1,0:T(1,128)}', space=vmem, size = 0x12000, scoped, tag = 'internal scratch']
  #allocation2 [shape = 'f32[64,1]{1,0:T(8,128)}', space=vmem, size = 0x8000, scoped, tag = 'scratch operand']
  #allocation3 [shape = 'f32[64,1]{1,0:T(8,128)}', space=vmem, size = 0x8000, scoped, tag = 'scratch operand']
  #allocation4 [shape = 'f32[64,32]{1,0:T(8,128)}', space=vmem, size = 0x8000, scoped, tag = 'scratch operand']
  #allocation5 [shape = 'f32[64,32]{1,0:T(8,128)}', space=vmem, size = 0x8000, scoped, tag = 'scratch operand']
  %s0 = inlined_call_operand.vmem [shape: f32[8,64,32], index: 0, kind: input, shape index: {}]
  %s1 = inlined_call_operand.vmem [shape: f32[8,64,32], index: 1, kind: input, shape index: {}]
  %s2 = inlined_call_operand.vmem [shape: f32[8,64,32], index: 2, kind: input, shape index: {}]
  %s3 = inlined_call_operand.vmem [shape: f32[8,64,32], index: 3, kind: output, shape index: {}]
  %s4 = sld [smem:[#allocation0]]
  $region53: #{tpu_custom_call.1} parent=0
    _
  %s6 = ssub.s32 1, %s4
  %s7 = scalar_select 0, %s6, %s4
  loop: start=0, step=1, limit=10
  $region2: #{tpu_custom_call.1} parent=0 // loop_pre_header
    _
  $region3: #{tpu_custom_call.1} parent=0 // loop_header
    %s9 = sphi 0, %s13
    %p10 = scmp.ge.s32.totalorder %s9, 10
    %s16 = sphi 0, %s35
    %s17 = sphi 0, %s31
    %s18 = sphi 0, %s27
    %s19 = sphi 0, %s16
    %s20 = sphi 0, %s17
    %s21 = sphi 0, %s18
    %s22 = sphi 0, %s19
    %s23 = sphi 0, %s20
    %s24 = sphi 0, %s21
    %s40 = sphi 0, %s42
    %s43 = sphi 0, %s40
    %s44 = sphi 0, %s43
    %s60 = sphi 0, %s44
    %s68 = sphi 0, %s70
    %s71 = sphi 0, %s68
    %s72 = sphi 0, %s71
    %s88 = sphi 0, %s72
    %s96 = sphi 0, %s98
    %s99 = sphi 0, %s96
    %s100 = sphi 0, %s99
    %s116 = sphi 0, %s100
    %s124 = sphi 0, %s126
    %s127 = sphi 0, %s124
    %s128 = sphi 0, %s127
    %s144 = sphi 0, %s128
  $region4: #{tpu_custom_call.1} parent=0 // loop_header_branch
    %12 = sbr.rel (%p10) target = $region8
  $region5: #{tpu_custom_call.1} parent=0 // loop_body
    %s14 = ssub.s32 %s9, 1
    %s15 = ssub.s32 %s9, 2
    %s25 = sadd.s32 1, %s18
    %p26 = scmp.ge.s32.totalorder %s25, 1
    %s27 = scalar_select %p26, 0, %s25
    %s28 = sadd.s32 1, %s17
    %s29 = scalar_select %p26, %s28, %s17
    %p30 = scmp.ge.s32.totalorder %s29, 1
    %s31 = scalar_select %p30, 0, %s29
    %s32 = sadd.s32 1, %s16
    %s33 = scalar_select %p30, %s32, %s16
    %p34 = scmp.ge.s32.totalorder %s33, 8
    %s35 = scalar_select %p34, 0, %s33
    %s36 = ssub.s32 %s16, %s35
    %s37 = ssub.s32 %s17, %s31
    %s38 = sor.u32 %s36, %s37
    %p39 = scmp.eq.s32.totalorder %s38, 0
    %s41 = sadd.s32 %s40, 1
    %s42 = scalar_select %p39, %s40, %s41
    %p45 = pneg %p39
    %p46 = scmp.eq.s32.totalorder %s9, 7
    %p47 = por %p45, %p46
    %p48 = scmp.ne.s32.totalorder %s40, %s43
    %p49 = scmp.eq.s32.totalorder %s9, 0
    %p50 = por %p48, %p49
    %p51 = scmp.ne.s32.totalorder %s40, %s43
    %p52 = scmp.eq.s32.totalorder %s14, 7
    %p53 = por %p51, %p52
    %p54 = scmp.ne.s32.totalorder %s43, %s44
    %p55 = scmp.eq.s32.totalorder %s14, 0
    %p56 = por %p54, %p55
    %p57 = scmp.ne.s32.totalorder %s43, %s44
    %p58 = scmp.eq.s32.totalorder %s15, 7
    %p59 = por %p57, %p58
    %p61 = scmp.ne.s32.totalorder %s44, %s60
    %p62 = scmp.eq.s32.totalorder %s15, 0
    %p63 = por %p61, %p62
    %s64 = ssub.s32 %s16, %s35
    %s65 = ssub.s32 %s18, %s27
    %s66 = sor.u32 %s64, %s65
    %p67 = scmp.eq.s32.totalorder %s66, 0
    %s69 = sadd.s32 %s68, 1
    %s70 = scalar_select %p67, %s68, %s69
    %p73 = pneg %p67
    %p74 = scmp.eq.s32.totalorder %s9, 7
    %p75 = por %p73, %p74
    %p76 = scmp.ne.s32.totalorder %s68, %s71
    %p77 = scmp.eq.s32.totalorder %s9, 0
    %p78 = por %p76, %p77
    %p79 = scmp.ne.s32.totalorder %s68, %s71
    %p80 = scmp.eq.s32.totalorder %s14, 7
    %p81 = por %p79, %p80
    %p82 = scmp.ne.s32.totalorder %s71, %s72
    %p83 = scmp.eq.s32.totalorder %s14, 0
    %p84 = por %p82, %p83
    %p85 = scmp.ne.s32.totalorder %s71, %s72
    %p86 = scmp.eq.s32.totalorder %s15, 7
    %p87 = por %p85, %p86
    %p89 = scmp.ne.s32.totalorder %s72, %s88
    %p90 = scmp.eq.s32.totalorder %s15, 0
    %p91 = por %p89, %p90
    %s92 = ssub.s32 %s16, %s35
    %s93 = ssub.s32 %s18, %s27
    %s94 = sor.u32 %s92, %s93
    %p95 = scmp.eq.s32.totalorder %s94, 0
    %s97 = sadd.s32 %s96, 1
    %s98 = scalar_select %p95, %s96, %s97
    %p101 = pneg %p95
    %p102 = scmp.eq.s32.totalorder %s9, 7
    %p103 = por %p101, %p102
    %p104 = scmp.ne.s32.totalorder %s96, %s99
    %p105 = scmp.eq.s32.totalorder %s9, 0
    %p106 = por %p104, %p105
    %p107 = scmp.ne.s32.totalorder %s96, %s99
    %p108 = scmp.eq.s32.totalorder %s14, 7
    %p109 = por %p107, %p108
    %p110 = scmp.ne.s32.totalorder %s99, %s100
    %p111 = scmp.eq.s32.totalorder %s14, 0
    %p112 = por %p110, %p111
    %p113 = scmp.ne.s32.totalorder %s99, %s100
    %p114 = scmp.eq.s32.totalorder %s15, 7
    %p115 = por %p113, %p114
    %p117 = scmp.ne.s32.totalorder %s100, %s116
    %p118 = scmp.eq.s32.totalorder %s15, 0
    %p119 = por %p117, %p118
    %s120 = ssub.s32 %s16, %s35
    %s121 = ssub.s32 %s17, %s31
    %s122 = sor.u32 %s120, %s121
    %p123 = scmp.eq.s32.totalorder %s122, 0
    %s125 = sadd.s32 %s124, 1
    %s126 = scalar_select %p123, %s124, %s125
    %p129 = pneg %p123
    %p130 = scmp.eq.s32.totalorder %s9, 7
    %p131 = por %p129, %p130
    %p132 = scmp.ne.s32.totalorder %s124, %s127
    %p133 = scmp.eq.s32.totalorder %s9, 0
    %p134 = por %p132, %p133
    %p135 = scmp.ne.s32.totalorder %s124, %s127
    %p136 = scmp.eq.s32.totalorder %s14, 7
    %p137 = por %p135, %p136
    %p138 = scmp.ne.s32.totalorder %s127, %s128
    %p139 = scmp.eq.s32.totalorder %s14, 0
    %p140 = por %p138, %p139
    %p141 = scmp.ne.s32.totalorder %s127, %s128
    %p142 = scmp.eq.s32.totalorder %s15, 7
    %p143 = por %p141, %p142
    %p145 = scmp.ne.s32.totalorder %s128, %s144
    %p146 = scmp.eq.s32.totalorder %s15, 0
    %p147 = por %p145, %p146
    %p148 = scmp.le.s32.totalorder 1, %s9
    %p149 = scmp.lt.s32.totalorder %s9, 9
    %p150 = pnand %p148, %p149
    %p151 = pneg %p150
    // Predicated region
    $region9: #{tpu_custom_call.1} parent=5 // pred_check
      _
    $region10: #{tpu_custom_call.1} parent=5 // pred_check_branch
      %153 = sbr.rel (%p150) target = $region12
    $region11: #{tpu_custom_call.1} parent=5 // pred_region
      %s154 = ssub.s32 %s9, 1
    $region12: #{tpu_custom_call.1} parent=5 // pred_fallthru
      _
    %p155 = scmp.lt.s32.totalorder %s9, 8
    // Predicated region
    $region13: #{tpu_custom_call.1} parent=5 // pred_check
      %p156 = pneg %p155
    $region14: #{tpu_custom_call.1} parent=5 // pred_check_branch
      %158 = sbr.rel (%p156) target = $region16
    $region15: #{tpu_custom_call.1} parent=5 // pred_region
      // Predicated region
      $region17: #{tpu_custom_call.1} parent=15 // pred_check
        %p159 = pneg %p50
      $region18: #{tpu_custom_call.1} parent=15 // pred_check_branch
        %161 = sbr.rel (%p159) target = $region20
      $region19: #{tpu_custom_call.1} parent=15 // pred_region
        %s162 = smul.u32 8, %s17
        %p163 = scmp.lt.s32.totalorder %s16, 7
        %s164 = scalar_select %p163, %s16, 7
        %p165 = scmp.lt.s32.totalorder %s162, 7
        %s166 = scalar_select %p165, %s162, 7
        %s167 = smul.addr %s164, 8
        %s168 = sadd.s32 %s166, %s167
        %s169 = smul.addr %s168, 8
        %s170 = scalar_lea.vmem %s0, %s169
        %s171 = smul.u32 8, %s17
      $region20: #{tpu_custom_call.1} parent=15 // pred_fallthru
        _
      // Predicated region
      $region21: #{tpu_custom_call.1} parent=15 // pred_check
        %p172 = pneg %p78
      $region22: #{tpu_custom_call.1} parent=15 // pred_check_branch
        %174 = sbr.rel (%p172) target = $region24
      $region23: #{tpu_custom_call.1} parent=15 // pred_region
        %s175 = smul.u32 8, %s18
        %p176 = scmp.lt.s32.totalorder %s16, 7
        %s177 = scalar_select %p176, %s16, 7
        %p178 = scmp.lt.s32.totalorder %s175, 7
        %s179 = scalar_select %p178, %s175, 7
        %s180 = smul.addr %s177, 8
        %s181 = sadd.s32 %s179, %s180
        %s182 = smul.addr %s181, 8
        %s183 = scalar_lea.vmem %s1, %s182
        %s184 = smul.u32 8, %s18
      $region24: #{tpu_custom_call.1} parent=15 // pred_fallthru
        _
      // Predicated region
      $region25: #{tpu_custom_call.1} parent=15 // pred_check
        %p185 = pneg %p106
      $region26: #{tpu_custom_call.1} parent=15 // pred_check_branch
        %187 = sbr.rel (%p185) target = $region28
      $region27: #{tpu_custom_call.1} parent=15 // pred_region
        %s188 = smul.u32 8, %s18
        %p189 = scmp.lt.s32.totalorder %s16, 7
        %s190 = scalar_select %p189, %s16, 7
        %p191 = scmp.lt.s32.totalorder %s188, 7
        %s192 = scalar_select %p191, %s188, 7
        %s193 = smul.addr %s190, 8
        %s194 = sadd.s32 %s192, %s193
        %s195 = smul.addr %s194, 8
        %s196 = scalar_lea.vmem %s2, %s195
        %s197 = smul.u32 8, %s18
      $region28: #{tpu_custom_call.1} parent=15 // pred_fallthru
        _
    $region16: #{tpu_custom_call.1} parent=5 // pred_fallthru
      _
    %p198 = scmp.le.s32.totalorder 1, %s9
    %p199 = scmp.lt.s32.totalorder %s9, 9
    %p200 = pnand %p198, %p199
    %p201 = pneg %p200
    // Predicated region
    $region29: #{tpu_custom_call.1} parent=5 // pred_check
      _
    $region30: #{tpu_custom_call.1} parent=5 // pred_check_branch
      %203 = sbr.rel (%p200) target = $region32
    $region31: #{tpu_custom_call.1} parent=5 // pred_region
      %s204 = ssub.s32 %s9, 1
      %s205 = smul.u32 8, %s20
      %p206 = scmp.lt.s32.totalorder %s19, 7
      %s207 = scalar_select %p206, %s19, 7
      %p208 = scmp.lt.s32.totalorder %s205, 7
      %s209 = scalar_select %p208, %s205, 7
      %s210 = smul.addr %s207, 8
      %s211 = sadd.s32 %s209, %s210
      %s212 = smul.addr %s211, 8
      %s213 = scalar_lea.vmem %s0, %s212
      %p214 = pneg %p56
      %p215 = pneg %p53
      %s216 = smul.u32 8, %s21
      %p217 = scmp.lt.s32.totalorder %s19, 7
      %s218 = scalar_select %p217, %s19, 7
      %p219 = scmp.lt.s32.totalorder %s216, 7
      %s220 = scalar_select %p219, %s216, 7
      %s221 = smul.addr %s218, 8
      %s222 = sadd.s32 %s220, %s221
      %s223 = smul.addr %s222, 8
      %s224 = scalar_lea.vmem %s1, %s223
      %p225 = pneg %p84
      %p226 = pneg %p81
      %s227 = smul.u32 8, %s21
      %p228 = scmp.lt.s32.totalorder %s19, 7
      %s229 = scalar_select %p228, %s19, 7
      %p230 = scmp.lt.s32.totalorder %s227, 7
      %s231 = scalar_select %p230, %s227, 7
      %s232 = smul.addr %s229, 8
      %s233 = sadd.s32 %s231, %s232
      %s234 = smul.addr %s233, 8
      %s235 = scalar_lea.vmem %s2, %s234
      %p236 = pneg %p112
      %p237 = pneg %p109
      %p238 = pneg %p140
      %p239 = pneg %p137
      %s240 = smul.u32 8, %s20
      %p241 = scmp.lt.s32.totalorder %s19, 7
      %s242 = scalar_select %p241, %s19, 7
      %p243 = scmp.lt.s32.totalorder %s240, 7
      %s244 = scalar_select %p243, %s240, 7
      %s245 = smul.addr %s242, 8
      %s246 = sadd.s32 %s244, %s245
      %s247 = smul.addr %s246, 8
      %s248 = scalar_lea.vmem %s3, %s247
      %s249 = smul.u32 8, %s20
      %p250 = scmp.lt.s32.totalorder %s19, 7
      %s251 = scalar_select %p250, %s19, 7
      %p252 = scmp.lt.s32.totalorder %s249, 7
      %s253 = scalar_select %p252, %s249, 7
      %s254 = smul.addr %s251, 8
      %s255 = sadd.s32 %s253, %s254
      %s256 = smul.addr %s255, 8
      %s257 = scalar_lea.vmem %s0, %s256
      %s258 = smul.u32 8, %s20
      %s259 = smul.u32 8, %s21
      %p260 = scmp.lt.s32.totalorder %s19, 7
      %s261 = scalar_select %p260, %s19, 7
      %p262 = scmp.lt.s32.totalorder %s259, 7
      %s263 = scalar_select %p262, %s259, 7
      %s264 = smul.addr %s261, 8
      %s265 = sadd.s32 %s263, %s264
      %s266 = smul.addr %s265, 8
      %s267 = scalar_lea.vmem %s1, %s266
      %s268 = smul.u32 8, %s21
      %s269 = smul.u32 8, %s21
      %p270 = scmp.lt.s32.totalorder %s19, 7
      %s271 = scalar_select %p270, %s19, 7
      %p272 = scmp.lt.s32.totalorder %s269, 7
      %s273 = scalar_select %p272, %s269, 7
      %s274 = smul.addr %s271, 8
      %s275 = sadd.s32 %s273, %s274
      %s276 = smul.addr %s275, 8
      %s277 = scalar_lea.vmem %s2, %s276
      %s278 = smul.u32 8, %s21
      %s279 = smul.u32 8, %s20
      %p280 = scmp.lt.s32.totalorder %s19, 7
      %s281 = scalar_select %p280, %s19, 7
      %p282 = scmp.lt.s32.totalorder %s279, 7
      %s283 = scalar_select %p282, %s279, 7
      %s284 = smul.addr %s281, 8
      %s285 = sadd.s32 %s283, %s284
      %s286 = smul.addr %s285, 8
      %s287 = scalar_lea.vmem %s3, %s286
      %s288 = smul.u32 8, %s20
      %p289 = scmp.eq.s32.totalorder %s21, 0
      // Predicated region
      $region33: #{tpu_custom_call.1} parent=31 // pred_check
        %p290 = pneg %p289
      $region34: #{tpu_custom_call.1} parent=31 // pred_check_branch
        %292 = sbr.rel (%p290) target = $region36
      $region35: #{tpu_custom_call.1} parent=31 // pred_region
        %vm293 = vcmask 7168
        %294 = vst.msk [vmem:[#allocation2] sm:$0xff] %vm293, -1e+10
        %295 = vst.msk [vmem:[#allocation2 + $0x8] sm:$0xff] %vm293, -1e+10
        %296 = vst.msk [vmem:[#allocation2 + $0x10] sm:$0xff] %vm293, -1e+10
        %297 = vst.msk [vmem:[#allocation2 + $0x18] sm:$0xff] %vm293, -1e+10
        %298 = vst.msk [vmem:[#allocation2 + $0x20] sm:$0xff] %vm293, -1e+10
        %299 = vst.msk [vmem:[#allocation2 + $0x28] sm:$0xff] %vm293, -1e+10
        %300 = vst.msk [vmem:[#allocation2 + $0x30] sm:$0xff] %vm293, -1e+10
        %301 = vst.msk [vmem:[#allocation2 + $0x38] sm:$0xff] %vm293, -1e+10
        %302 = vst.msk [vmem:[#allocation3] sm:$0xff] %vm293, 0.0
        %303 = vst.msk [vmem:[#allocation3 + $0x8] sm:$0xff] %vm293, 0.0
        %304 = vst.msk [vmem:[#allocation3 + $0x10] sm:$0xff] %vm293, 0.0
        %305 = vst.msk [vmem:[#allocation3 + $0x18] sm:$0xff] %vm293, 0.0
        %306 = vst.msk [vmem:[#allocation3 + $0x20] sm:$0xff] %vm293, 0.0
        %307 = vst.msk [vmem:[#allocation3 + $0x28] sm:$0xff] %vm293, 0.0
        %308 = vst.msk [vmem:[#allocation3 + $0x30] sm:$0xff] %vm293, 0.0
        %309 = vst.msk [vmem:[#allocation3 + $0x38] sm:$0xff] %vm293, 0.0
        %vm310 = vcmask 261120
        %311 = vst.msk [vmem:[#allocation4] sm:$0xff] %vm310, 0.0
        %312 = vst.msk [vmem:[#allocation4 + $0x8] sm:$0xff] %vm310, 0.0
        %313 = vst.msk [vmem:[#allocation4 + $0x10] sm:$0xff] %vm310, 0.0
        %314 = vst.msk [vmem:[#allocation4 + $0x18] sm:$0xff] %vm310, 0.0
        %315 = vst.msk [vmem:[#allocation4 + $0x20] sm:$0xff] %vm310, 0.0
        %316 = vst.msk [vmem:[#allocation4 + $0x28] sm:$0xff] %vm310, 0.0
        %317 = vst.msk [vmem:[#allocation4 + $0x30] sm:$0xff] %vm310, 0.0
        %318 = vst.msk [vmem:[#allocation4 + $0x38] sm:$0xff] %vm310, 0.0
        %v319 = vld [vmem:[%s257] sm:$0xff]
        %v320 = vld [vmem:[%s257 + $0x8] sm:$0xff]
        %v321 = vld [vmem:[%s257 + $0x10] sm:$0xff]
        %v322 = vld [vmem:[%s257 + $0x18] sm:$0xff]
        %v323 = vld [vmem:[%s257 + $0x20] sm:$0xff]
        %v324 = vld [vmem:[%s257 + $0x28] sm:$0xff]
        %v325 = vld [vmem:[%s257 + $0x30] sm:$0xff]
        %v326 = vld [vmem:[%s257 + $0x38] sm:$0xff]
        %v327 = vmul.f32 %v319, 0.17677669
        %v328 = vmul.f32 %v320, 0.17677669
        %v329 = vmul.f32 %v321, 0.17677669
        %v330 = vmul.f32 %v322, 0.17677669
        %v331 = vmul.f32 %v323, 0.17677669
        %v332 = vmul.f32 %v324, 0.17677669
        %v333 = vmul.f32 %v325, 0.17677669
        %v334 = vmul.f32 %v326, 0.17677669
        %335 = vst.msk [vmem:[#allocation5] sm:$0xff] %vm310, %v327
        %336 = vst.msk [vmem:[#allocation5 + $0x8] sm:$0xff] %vm310, %v328
        %337 = vst.msk [vmem:[#allocation5 + $0x10] sm:$0xff] %vm310, %v329
        %338 = vst.msk [vmem:[#allocation5 + $0x18] sm:$0xff] %vm310, %v330
        %339 = vst.msk [vmem:[#allocation5 + $0x20] sm:$0xff] %vm310, %v331
        %340 = vst.msk [vmem:[#allocation5 + $0x28] sm:$0xff] %vm310, %v332
        %341 = vst.msk [vmem:[#allocation5 + $0x30] sm:$0xff] %vm310, %v333
        %342 = vst.msk [vmem:[#allocation5 + $0x38] sm:$0xff] %vm310, %v334
      $region36: #{tpu_custom_call.1} parent=31 // pred_fallthru
        _
      %v343 = vld [vmem:[#allocation5] sm:$0xff]
      %v344 = vld [vmem:[#allocation5 + $0x8] sm:$0xff]
      %v345 = vld [vmem:[#allocation5 + $0x10] sm:$0xff]
      %v346 = vld [vmem:[#allocation5 + $0x18] sm:$0xff]
      %v347 = vld [vmem:[#allocation5 + $0x20] sm:$0xff]
      %v348 = vld [vmem:[#allocation5 + $0x28] sm:$0xff]
      %v349 = vld [vmem:[#allocation5 + $0x30] sm:$0xff]
      %v350 = vld [vmem:[#allocation5 + $0x38] sm:$0xff]
      %v351 = vld [vmem:[%s267] sm:$0xff]
      %v352 = vld [vmem:[%s267 + $0x8] sm:$0xff]
      %v353 = vld [vmem:[%s267 + $0x10] sm:$0xff]
      %v354 = vld [vmem:[%s267 + $0x18] sm:$0xff]
      %v355 = vld [vmem:[%s267 + $0x20] sm:$0xff]
      %v356 = vld [vmem:[%s267 + $0x28] sm:$0xff]
      %v357 = vld [vmem:[%s267 + $0x30] sm:$0xff]
      %v358 = vld [vmem:[%s267 + $0x38] sm:$0xff]
      %v359 = vld [vmem:[%s277] sm:$0xff]
      %v360 = vld [vmem:[%s277 + $0x8] sm:$0xff]
      %v361 = vld [vmem:[%s277 + $0x10] sm:$0xff]
      %v362 = vld [vmem:[%s277 + $0x18] sm:$0xff]
      %v363 = vld [vmem:[%s277 + $0x20] sm:$0xff]
      %v364 = vld [vmem:[%s277 + $0x28] sm:$0xff]
      %v365 = vld [vmem:[%s277 + $0x30] sm:$0xff]
      %v366 = vld [vmem:[%s277 + $0x38] sm:$0xff]
      %vm367 = vcmask 261120
      %v369 = vsel %vm367, %v343, 0
      %v372 = vsel %vm367, %v344, 0
      %v375 = vsel %vm367, %v345, 0
      %v378 = vsel %vm367, %v346, 0
      %v381 = vsel %vm367, %v347, 0
      %v384 = vsel %vm367, %v348, 0
      %v387 = vsel %vm367, %v349, 0
      %v390 = vsel %vm367, %v350, 0
      %v393 = vsel %vm367, %v351, 0
      %v396 = vsel %vm367, %v352, 0
      %v399 = vsel %vm367, %v353, 0
      %v402 = vsel %vm367, %v354, 0
      %v405 = vsel %vm367, %v355, 0
      %v408 = vsel %vm367, %v356, 0
      %v411 = vsel %vm367, %v357, 0
      %v414 = vsel %vm367, %v358, 0
      %416 = vmatprep.subr.mxu0 0.0
      %417 = vmatpush1.xpose.msra.mxu0 %v393
      %418 = vmatprep.subr.mxu0 0.0
      %419 = vmatpush1.xpose.msra.mxu0 %v396
      %420 = vmatprep.subr.mxu0 0.0
      %421 = vmatpush1.xpose.msra.mxu0 %v399
      %422 = vmatprep.subr.mxu0 0.0
      %423 = vmatpush1.xpose.msra.mxu0 %v402
      %424 = vmatprep.subr.mxu0 0.0
      %425 = vmatpush1.xpose.msra.mxu0 %v405
      %426 = vmatprep.subr.mxu0 0.0
      %427 = vmatpush1.xpose.msra.mxu0 %v408
      %428 = vmatprep.subr.mxu0 0.0
      %429 = vmatpush1.xpose.msra.mxu0 %v411
      %430 = vmatprep.subr.mxu0 0.0
      %431 = vmatpush1.xpose.msra.mxu0 %v414
      %432 = vmatprep.subr.mxu0 0.0
      %433 = vmatpush1.xpose.msra.mxu0 0.0
      %434 = vmatprep.subr.mxu0 0.0
      %435 = vmatpush1.xpose.msra.mxu0 0.0
      %436 = vmatprep.subr.mxu0 0.0
      %437 = vmatpush1.xpose.msra.mxu0 0.0
      %438 = vmatprep.subr.mxu0 0.0
      %439 = vmatpush1.xpose.msra.mxu0 0.0
      %440 = vmatprep.subr.mxu0 0.0
      %441 = vmatpush1.xpose.msra.mxu0 0.0
      %442 = vmatprep.subr.mxu0 0.0
      %443 = vmatpush1.xpose.msra.mxu0 0.0
      %444 = vmatprep.subr.mxu0 0.0
      %445 = vmatpush1.xpose.msra.mxu0 0.0
      %446 = vmatprep.subr.mxu0 0.0
      %447 = vmatpush1.xpose.msra.mxu0 0.0
      %448 = vmatprep.subr.mxu0 0.0
      %449 = vmatpush1.xpose.msra.mxu0 0.0
      %450 = vmatprep.subr.mxu0 0.0
      %451 = vmatpush1.xpose.msra.mxu0 0.0
      %452 = vmatprep.subr.mxu0 0.0
      %453 = vmatpush1.xpose.msra.mxu0 0.0
      %454 = vmatprep.subr.mxu0 0.0
      %455 = vmatpush1.xpose.msra.mxu0 0.0
      %456 = vmatprep.subr.mxu0 0.0
      %457 = vmatpush1.xpose.msra.mxu0 0.0
      %458 = vmatprep.subr.mxu0 0.0
      %459 = vmatpush1.xpose.msra.mxu0 0.0
      %460 = vmatprep.subr.mxu0 0.0
      %461 = vmatpush1.xpose.msra.mxu0 0.0
      %462 = vmatprep.subr.mxu0 0.0
      %463 = vmatpush1.xpose.msra.mxu0 0.0
      %464 = vmatprep.subr.mxu0 0.0
      %465 = vmatpush1.xpose.msra.mxu0 0.0
      %466 = vmatprep.subr.mxu0 0.0
      %467 = vmatpush1.xpose.msra.mxu0 0.0
      %468 = vmatprep.subr.mxu0 0.0
      %469 = vmatpush1.xpose.msra.mxu0 0.0
      %470 = vmatprep.subr.mxu0 0.0
      %471 = vmatpush1.xpose.msra.mxu0 0.0
      %472 = vmatprep.subr.mxu0 0.0
      %473 = vmatpush1.xpose.msra.mxu0 0.0
      %474 = vmatprep.subr.mxu0 0.0
      %475 = vmatpush1.xpose.msra.mxu0 0.0
      %476 = vmatprep.subr.mxu0 0.0
      %477 = vmatpush1.xpose.msra.mxu0 0.0
      %478 = vmatprep.subr.mxu0 0.0
      %479 = vmatpush1.xpose.msra.mxu0 0.0
      %480 = vmatprep.mubr.f32.mxu0 0.0
      %481 = vmatmul.mubr.f32.gmra.mrb[0].mxu0 %v369
      %v482 = vpop.f32.mrb[0].mxu0
      %v483 = vadd.f32 0.0, %v482
      %v484 = vpop.f32.mrb[0].mxu0
      %485 = vmatprep.mubr.f32.mxu0 0.0
      %486 = vmatmul.mubr.f32.gmra.mrb[0].mxu0 %v372
      %v487 = vpop.f32.mrb[0].mxu0
      %v488 = vadd.f32 0.0, %v487
      %v489 = vpop.f32.mrb[0].mxu0
      %490 = vmatprep.mubr.f32.mxu0 0.0
      %491 = vmatmul.mubr.f32.gmra.mrb[0].mxu0 %v375
      %v492 = vpop.f32.mrb[0].mxu0
      %v493 = vadd.f32 0.0, %v492
      %v494 = vpop.f32.mrb[0].mxu0
      %495 = vmatprep.mubr.f32.mxu0 0.0
      %496 = vmatmul.mubr.f32.gmra.mrb[0].mxu0 %v378
      %v497 = vpop.f32.mrb[0].mxu0
      %v498 = vadd.f32 0.0, %v497
      %v499 = vpop.f32.mrb[0].mxu0
      %500 = vmatprep.mubr.f32.mxu0 0.0
      %501 = vmatmul.mubr.f32.gmra.mrb[0].mxu0 %v381
      %v502 = vpop.f32.mrb[0].mxu0
      %v503 = vadd.f32 0.0, %v502
      %v504 = vpop.f32.mrb[0].mxu0
      %505 = vmatprep.mubr.f32.mxu0 0.0
      %506 = vmatmul.mubr.f32.gmra.mrb[0].mxu0 %v384
      %v507 = vpop.f32.mrb[0].mxu0
      %v508 = vadd.f32 0.0, %v507
      %v509 = vpop.f32.mrb[0].mxu0
      %510 = vmatprep.mubr.f32.mxu0 0.0
      %511 = vmatmul.mubr.f32.gmra.mrb[0].mxu0 %v387
      %v512 = vpop.f32.mrb[0].mxu0
      %v513 = vadd.f32 0.0, %v512
      %v514 = vpop.f32.mrb[0].mxu0
      %515 = vmatprep.mubr.f32.mxu0 0.0
      %516 = vmatmul.mubr.f32.gmra.mrb[0].mxu0 %v390
      %v517 = vpop.f32.mrb[0].mxu0
      %v518 = vadd.f32 0.0, %v517
      %v519 = vpop.f32.mrb[0].mxu0
      %520 = vdwg.mxu0
      %v521 = vld [vmem:[#allocation2] sm:$0xff]
      %v522 = vld [vmem:[#allocation2 + $0x8] sm:$0xff]
      %v523 = vld [vmem:[#allocation2 + $0x10] sm:$0xff]
      %v524 = vld [vmem:[#allocation2 + $0x18] sm:$0xff]
      %v525 = vld [vmem:[#allocation2 + $0x20] sm:$0xff]
      %v526 = vld [vmem:[#allocation2 + $0x28] sm:$0xff]
      %v527 = vld [vmem:[#allocation2 + $0x30] sm:$0xff]
      %v528 = vld [vmem:[#allocation2 + $0x38] sm:$0xff]
      %vm529 = vcmask 523264
      %v530 = vsel %vm529, %v483, -inf
      %531 = vmax.xlane.f32.xlu0 %v530
      %v532 = vpop.xlane.xlu0 %531
      %v533 = vsel %vm529, %v488, -inf
      %534 = vmax.xlane.f32.xlu0 %v533
      %v535 = vpop.xlane.xlu0 %534
      %v536 = vsel %vm529, %v493, -inf
      %537 = vmax.xlane.f32.xlu0 %v536
      %v538 = vpop.xlane.xlu0 %537
      %v539 = vsel %vm529, %v498, -inf
      %540 = vmax.xlane.f32.xlu0 %v539
      %v541 = vpop.xlane.xlu0 %540
      %v542 = vsel %vm529, %v503, -inf
      %543 = vmax.xlane.f32.xlu0 %v542
      %v544 = vpop.xlane.xlu0 %543
      %v545 = vsel %vm529, %v508, -inf
      %546 = vmax.xlane.f32.xlu0 %v545
      %v547 = vpop.xlane.xlu0 %546
      %v548 = vsel %vm529, %v513, -inf
      %549 = vmax.xlane.f32.xlu0 %v548
      %v550 = vpop.xlane.xlu0 %549
      %v551 = vsel %vm529, %v518, -inf
      %552 = vmax.xlane.f32.xlu0 %v551
      %v553 = vpop.xlane.xlu0 %552
      %v554 = vmax.f32 %v521, %v532
      %v555 = vmax.f32 %v522, %v535
      %v556 = vmax.f32 %v523, %v538
      %v557 = vmax.f32 %v524, %v541
      %v558 = vmax.f32 %v525, %v544
      %v559 = vmax.f32 %v526, %v547
      %v560 = vmax.f32 %v527, %v550
      %v561 = vmax.f32 %v528, %v553
      %563 = vset.pattern.permute.xlu0 0
      %564 = vperm.xlu0 %563, %v554
      %v565 = vpop.permute.xlu0 %564
      %568 = vset.pattern.permute.xlu0 0
      %569 = vperm.xlu0 %568, %v555
      %v570 = vpop.permute.xlu0 %569
      %573 = vset.pattern.permute.xlu0 0
      %574 = vperm.xlu0 %573, %v556
      %v575 = vpop.permute.xlu0 %574
      %578 = vset.pattern.permute.xlu0 0
      %579 = vperm.xlu0 %578, %v557
      %v580 = vpop.permute.xlu0 %579
      %583 = vset.pattern.permute.xlu0 0
      %584 = vperm.xlu0 %583, %v558
      %v585 = vpop.permute.xlu0 %584
      %588 = vset.pattern.permute.xlu0 0
      %589 = vperm.xlu0 %588, %v559
      %v590 = vpop.permute.xlu0 %589
      %593 = vset.pattern.permute.xlu0 0
      %594 = vperm.xlu0 %593, %v560
      %v595 = vpop.permute.xlu0 %594
      %598 = vset.pattern.permute.xlu0 0
      %599 = vperm.xlu0 %598, %v561
      %v600 = vpop.permute.xlu0 %599
      %v602 = vsub.f32 %v483, %v565
      %v603 = vsub.f32 %v488, %v570
      %v604 = vsub.f32 %v493, %v575
      %v605 = vsub.f32 %v498, %v580
      %v606 = vsub.f32 %v503, %v585
      %v607 = vsub.f32 %v508, %v590
      %v608 = vsub.f32 %v513, %v595
      %v609 = vsub.f32 %v518, %v600
      %v610 = vmul.f32 %v602, 1.442695
      %v611 = vpow.pop %v610
      %v612 = vmul.f32 %v603, 1.442695
      %v613 = vpow.pop %v612
      %v614 = vmul.f32 %v604, 1.442695
      %v615 = vpow.pop %v614
      %v616 = vmul.f32 %v605, 1.442695
      %v617 = vpow.pop %v616
      %v618 = vmul.f32 %v606, 1.442695
      %v619 = vpow.pop %v618
      %v620 = vmul.f32 %v607, 1.442695
      %v621 = vpow.pop %v620
      %v622 = vmul.f32 %v608, 1.442695
      %v623 = vpow.pop %v622
      %v624 = vmul.f32 %v609, 1.442695
      %v625 = vpow.pop %v624
      %v626 = vsub.f32 %v521, %v554
      %v627 = vsub.f32 %v522, %v555
      %v628 = vsub.f32 %v523, %v556
      %v629 = vsub.f32 %v524, %v557
      %v630 = vsub.f32 %v525, %v558
      %v631 = vsub.f32 %v526, %v559
      %v632 = vsub.f32 %v527, %v560
      %v633 = vsub.f32 %v528, %v561
      %v634 = vmul.f32 %v626, 1.442695
      %v635 = vpow.pop %v634
      %v636 = vmul.f32 %v627, 1.442695
      %v637 = vpow.pop %v636
      %v638 = vmul.f32 %v628, 1.442695
      %v639 = vpow.pop %v638
      %v640 = vmul.f32 %v629, 1.442695
      %v641 = vpow.pop %v640
      %v642 = vmul.f32 %v630, 1.442695
      %v643 = vpow.pop %v642
      %v644 = vmul.f32 %v631, 1.442695
      %v645 = vpow.pop %v644
      %v646 = vmul.f32 %v632, 1.442695
      %v647 = vpow.pop %v646
      %v648 = vmul.f32 %v633, 1.442695
      %v649 = vpow.pop %v648
      %v650 = vld [vmem:[#allocation3] sm:$0xff]
      %v651 = vld [vmem:[#allocation3 + $0x8] sm:$0xff]
      %v652 = vld [vmem:[#allocation3 + $0x10] sm:$0xff]
      %v653 = vld [vmem:[#allocation3 + $0x18] sm:$0xff]
      %v654 = vld [vmem:[#allocation3 + $0x20] sm:$0xff]
      %v655 = vld [vmem:[#allocation3 + $0x28] sm:$0xff]
      %v656 = vld [vmem:[#allocation3 + $0x30] sm:$0xff]
      %v657 = vld [vmem:[#allocation3 + $0x38] sm:$0xff]
      %v658 = vmul.f32 %v635, %v650
      %v659 = vmul.f32 %v637, %v651
      %v660 = vmul.f32 %v639, %v652
      %v661 = vmul.f32 %v641, %v653
      %v662 = vmul.f32 %v643, %v654
      %v663 = vmul.f32 %v645, %v655
      %v664 = vmul.f32 %v647, %v656
      %v665 = vmul.f32 %v649, %v657
      %v666 = vsel %vm529, %v611, 0.0
      %667 = vadd.xlane.f32.xlu0 %v666
      %v668 = vpop.xlane.xlu0 %667
      %v669 = vsel %vm529, %v613, 0.0
      %670 = vadd.xlane.f32.xlu0 %v669
      %v671 = vpop.xlane.xlu0 %670
      %v672 = vsel %vm529, %v615, 0.0
      %673 = vadd.xlane.f32.xlu0 %v672
      %v674 = vpop.xlane.xlu0 %673
      %v675 = vsel %vm529, %v617, 0.0
      %676 = vadd.xlane.f32.xlu0 %v675
      %v677 = vpop.xlane.xlu0 %676
      %v678 = vsel %vm529, %v619, 0.0
      %679 = vadd.xlane.f32.xlu0 %v678
      %v680 = vpop.xlane.xlu0 %679
      %v681 = vsel %vm529, %v621, 0.0
      %682 = vadd.xlane.f32.xlu0 %v681
      %v683 = vpop.xlane.xlu0 %682
      %v684 = vsel %vm529, %v623, 0.0
      %685 = vadd.xlane.f32.xlu0 %v684
      %v686 = vpop.xlane.xlu0 %685
      %v687 = vsel %vm529, %v625, 0.0
      %688 = vadd.xlane.f32.xlu0 %v687
      %v689 = vpop.xlane.xlu0 %688
      %v690 = vadd.f32 %v668, 1e-10
      %v691 = vadd.f32 %v671, 1e-10
      %v692 = vadd.f32 %v674, 1e-10
      %v693 = vadd.f32 %v677, 1e-10
      %v694 = vadd.f32 %v680, 1e-10
      %v695 = vadd.f32 %v683, 1e-10
      %v696 = vadd.f32 %v686, 1e-10
      %v697 = vadd.f32 %v689, 1e-10
      %v698 = vadd.f32 %v658, %v690
      %v699 = vadd.f32 %v659, %v691
      %v700 = vadd.f32 %v660, %v692
      %v701 = vadd.f32 %v661, %v693
      %v702 = vadd.f32 %v662, %v694
      %v703 = vadd.f32 %v663, %v695
      %v704 = vadd.f32 %v664, %v696
      %v705 = vadd.f32 %v665, %v697
      %vm706 = vcmask 7168
      %707 = vst.msk [vmem:[#allocation3] sm:$0xff] %vm706, %v698
      %708 = vst.msk [vmem:[#allocation3 + $0x8] sm:$0xff] %vm706, %v699
      %709 = vst.msk [vmem:[#allocation3 + $0x10] sm:$0xff] %vm706, %v700
      %710 = vst.msk [vmem:[#allocation3 + $0x18] sm:$0xff] %vm706, %v701
      %711 = vst.msk [vmem:[#allocation3 + $0x20] sm:$0xff] %vm706, %v702
      %712 = vst.msk [vmem:[#allocation3 + $0x28] sm:$0xff] %vm706, %v703
      %713 = vst.msk [vmem:[#allocation3 + $0x30] sm:$0xff] %vm706, %v704
      %714 = vst.msk [vmem:[#allocation3 + $0x38] sm:$0xff] %vm706, %v705
      %v715 = vld [vmem:[#allocation4] sm:$0xff]
      %v716 = vld [vmem:[#allocation4 + $0x8] sm:$0xff]
      %v717 = vld [vmem:[#allocation4 + $0x10] sm:$0xff]
      %v718 = vld [vmem:[#allocation4 + $0x18] sm:$0xff]
      %v719 = vld [vmem:[#allocation4 + $0x20] sm:$0xff]
      %v720 = vld [vmem:[#allocation4 + $0x28] sm:$0xff]
      %v721 = vld [vmem:[#allocation4 + $0x30] sm:$0xff]
      %v722 = vld [vmem:[#allocation4 + $0x38] sm:$0xff]
      %724 = vset.pattern.permute.xlu0 0
      %725 = vperm.xlu0 %724, %v635
      %v726 = vpop.permute.xlu0 %725
      %729 = vset.pattern.permute.xlu0 0
      %730 = vperm.xlu0 %729, %v637
      %v731 = vpop.permute.xlu0 %730
      %734 = vset.pattern.permute.xlu0 0
      %735 = vperm.xlu0 %734, %v639
      %v736 = vpop.permute.xlu0 %735
      %739 = vset.pattern.permute.xlu0 0
      %740 = vperm.xlu0 %739, %v641
      %v741 = vpop.permute.xlu0 %740
      %744 = vset.pattern.permute.xlu0 0
      %745 = vperm.xlu0 %744, %v643
      %v746 = vpop.permute.xlu0 %745
      %749 = vset.pattern.permute.xlu0 0
      %750 = vperm.xlu0 %749, %v645
      %v751 = vpop.permute.xlu0 %750
      %754 = vset.pattern.permute.xlu0 0
      %755 = vperm.xlu0 %754, %v647
      %v756 = vpop.permute.xlu0 %755
      %759 = vset.pattern.permute.xlu0 0
      %760 = vperm.xlu0 %759, %v649
      %v761 = vpop.permute.xlu0 %760
      %v763 = vmul.f32 %v726, %v715
      %v764 = vmul.f32 %v731, %v716
      %v765 = vmul.f32 %v736, %v717
      %v766 = vmul.f32 %v741, %v718
      %v767 = vmul.f32 %v746, %v719
      %v768 = vmul.f32 %v751, %v720
      %v769 = vmul.f32 %v756, %v721
      %v770 = vmul.f32 %v761, %v722
      %v772 = vsel %vm529, %v611, 0
      %v775 = vsel %vm529, %v613, 0
      %v778 = vsel %vm529, %v615, 0
      %v781 = vsel %vm529, %v617, 0
      %v784 = vsel %vm529, %v619, 0
      %v787 = vsel %vm529, %v621, 0
      %v790 = vsel %vm529, %v623, 0
      %v793 = vsel %vm529, %v625, 0
      %795 = vmatprep.subr.mxu0 0.0
      %796 = vmatpush1.msra.mxu0 %v359
      %797 = vmatprep.subr.mxu0 0.0
      %798 = vmatpush1.msra.mxu0 %v360
      %799 = vmatprep.subr.mxu0 0.0
      %800 = vmatpush1.msra.mxu0 %v361
      %801 = vmatprep.subr.mxu0 0.0
      %802 = vmatpush1.msra.mxu0 %v362
      %803 = vmatprep.subr.mxu0 0.0
      %804 = vmatpush1.msra.mxu0 %v363
      %805 = vmatprep.subr.mxu0 0.0
      %806 = vmatpush1.msra.mxu0 %v364
      %807 = vmatprep.subr.mxu0 0.0
      %808 = vmatpush1.msra.mxu0 %v365
      %809 = vmatprep.subr.mxu0 0.0
      %810 = vmatpush1.msra.mxu0 %v366
      %811 = vmatprep.subr.mxu0 0.0
      %812 = vmatpush1.msra.mxu0 0.0
      %813 = vmatprep.subr.mxu0 0.0
      %814 = vmatpush1.msra.mxu0 0.0
      %815 = vmatprep.subr.mxu0 0.0
      %816 = vmatpush1.msra.mxu0 0.0
      %817 = vmatprep.subr.mxu0 0.0
      %818 = vmatpush1.msra.mxu0 0.0
      %819 = vmatprep.subr.mxu0 0.0
      %820 = vmatpush1.msra.mxu0 0.0
      %821 = vmatprep.subr.mxu0 0.0
      %822 = vmatpush1.msra.mxu0 0.0
      %823 = vmatprep.subr.mxu0 0.0
      %824 = vmatpush1.msra.mxu0 0.0
      %825 = vmatprep.subr.mxu0 0.0
      %826 = vmatpush1.msra.mxu0 0.0
      %827 = vmatprep.subr.mxu0 0.0
      %828 = vmatpush1.msra.mxu0 0.0
      %829 = vmatprep.subr.mxu0 0.0
      %830 = vmatpush1.msra.mxu0 0.0
      %831 = vmatprep.subr.mxu0 0.0
      %832 = vmatpush1.msra.mxu0 0.0
      %833 = vmatprep.subr.mxu0 0.0
      %834 = vmatpush1.msra.mxu0 0.0
      %835 = vmatprep.subr.mxu0 0.0
      %836 = vmatpush1.msra.mxu0 0.0
      %837 = vmatprep.subr.mxu0 0.0
      %838 = vmatpush1.msra.mxu0 0.0
      %839 = vmatprep.subr.mxu0 0.0
      %840 = vmatpush1.msra.mxu0 0.0
      %841 = vmatprep.subr.mxu0 0.0
      %842 = vmatpush1.msra.mxu0 0.0
      %843 = vmatprep.subr.mxu0 0.0
      %844 = vmatpush1.msra.mxu0 0.0
      %845 = vmatprep.subr.mxu0 0.0
      %846 = vmatpush1.msra.mxu0 0.0
      %847 = vmatprep.subr.mxu0 0.0
      %848 = vmatpush1.msra.mxu0 0.0
      %849 = vmatprep.subr.mxu0 0.0
      %850 = vmatpush1.msra.mxu0 0.0
      %851 = vmatprep.subr.mxu0 0.0
      %852 = vmatpush1.msra.mxu0 0.0
      %853 = vmatprep.subr.mxu0 0.0
      %854 = vmatpush1.msra.mxu0 0.0
      %855 = vmatprep.subr.mxu0 0.0
      %856 = vmatpush1.msra.mxu0 0.0
      %857 = vmatprep.subr.mxu0 0.0
      %858 = vmatpush1.msra.mxu0 0.0
      %859 = vmatprep.mubr.f32.mxu0 0.0
      %860 = vmatmul.mubr.f32.gmra.mrb[0].mxu0 %v772
      %v861 = vpop.f32.mrb[0].mxu0
      %v862 = vadd.f32 0.0, %v861
      %v863 = vpop.f32.mrb[0].mxu0
      %864 = vmatprep.mubr.f32.mxu0 0.0
      %865 = vmatmul.mubr.f32.gmra.mrb[0].mxu0 %v775
      %v866 = vpop.f32.mrb[0].mxu0
      %v867 = vadd.f32 0.0, %v866
      %v868 = vpop.f32.mrb[0].mxu0
      %869 = vmatprep.mubr.f32.mxu0 0.0
      %870 = vmatmul.mubr.f32.gmra.mrb[0].mxu0 %v778
      %v871 = vpop.f32.mrb[0].mxu0
      %v872 = vadd.f32 0.0, %v871
      %v873 = vpop.f32.mrb[0].mxu0
      %874 = vmatprep.mubr.f32.mxu0 0.0
      %875 = vmatmul.mubr.f32.gmra.mrb[0].mxu0 %v781
      %v876 = vpop.f32.mrb[0].mxu0
      %v877 = vadd.f32 0.0, %v876
      %v878 = vpop.f32.mrb[0].mxu0
      %879 = vmatprep.mubr.f32.mxu0 0.0
      %880 = vmatmul.mubr.f32.gmra.mrb[0].mxu0 %v784
      %v881 = vpop.f32.mrb[0].mxu0
      %v882 = vadd.f32 0.0, %v881
      %v883 = vpop.f32.mrb[0].mxu0
      %884 = vmatprep.mubr.f32.mxu0 0.0
      %885 = vmatmul.mubr.f32.gmra.mrb[0].mxu0 %v787
      %v886 = vpop.f32.mrb[0].mxu0
      %v887 = vadd.f32 0.0, %v886
      %v888 = vpop.f32.mrb[0].mxu0
      %889 = vmatprep.mubr.f32.mxu0 0.0
      %890 = vmatmul.mubr.f32.gmra.mrb[0].mxu0 %v790
      %v891 = vpop.f32.mrb[0].mxu0
      %v892 = vadd.f32 0.0, %v891
      %v893 = vpop.f32.mrb[0].mxu0
      %894 = vmatprep.mubr.f32.mxu0 0.0
      %895 = vmatmul.mubr.f32.gmra.mrb[0].mxu0 %v793
      %v896 = vpop.f32.mrb[0].mxu0
      %v897 = vadd.f32 0.0, %v896
      %v898 = vpop.f32.mrb[0].mxu0
      %899 = vdwg.mxu0
      %v900 = vadd.f32 %v763, %v862
      %v901 = vadd.f32 %v764, %v867
      %v902 = vadd.f32 %v765, %v872
      %v903 = vadd.f32 %v766, %v877
      %v904 = vadd.f32 %v767, %v882
      %v905 = vadd.f32 %v768, %v887
      %v906 = vadd.f32 %v769, %v892
      %v907 = vadd.f32 %v770, %v897
      %908 = vst.msk [vmem:[#allocation4] sm:$0xff] %vm367, %v900
      %909 = vst.msk [vmem:[#allocation4 + $0x8] sm:$0xff] %vm367, %v901
      %910 = vst.msk [vmem:[#allocation4 + $0x10] sm:$0xff] %vm367, %v902
      %911 = vst.msk [vmem:[#allocation4 + $0x18] sm:$0xff] %vm367, %v903
      %912 = vst.msk [vmem:[#allocation4 + $0x20] sm:$0xff] %vm367, %v904
      %913 = vst.msk [vmem:[#allocation4 + $0x28] sm:$0xff] %vm367, %v905
      %914 = vst.msk [vmem:[#allocation4 + $0x30] sm:$0xff] %vm367, %v906
      %915 = vst.msk [vmem:[#allocation4 + $0x38] sm:$0xff] %vm367, %v907
      %916 = vst.msk [vmem:[#allocation2] sm:$0xff] %vm706, %v554
      %917 = vst.msk [vmem:[#allocation2 + $0x8] sm:$0xff] %vm706, %v555
      %918 = vst.msk [vmem:[#allocation2 + $0x10] sm:$0xff] %vm706, %v556
      %919 = vst.msk [vmem:[#allocation2 + $0x18] sm:$0xff] %vm706, %v557
      %920 = vst.msk [vmem:[#allocation2 + $0x20] sm:$0xff] %vm706, %v558
      %921 = vst.msk [vmem:[#allocation2 + $0x28] sm:$0xff] %vm706, %v559
      %922 = vst.msk [vmem:[#allocation2 + $0x30] sm:$0xff] %vm706, %v560
      %923 = vst.msk [vmem:[#allocation2 + $0x38] sm:$0xff] %vm706, %v561
      // Predicated region
      $region37: #{tpu_custom_call.1} parent=31 // pred_check
        %p924 = pneg %p289
      $region38: #{tpu_custom_call.1} parent=31 // pred_check_branch
        %926 = sbr.rel (%p924) target = $region40
      $region39: #{tpu_custom_call.1} parent=31 // pred_region
        %v927 = vld [vmem:[#allocation3] sm:$0xff]
        %v928 = vld [vmem:[#allocation3 + $0x8] sm:$0xff]
        %v929 = vld [vmem:[#allocation3 + $0x10] sm:$0xff]
        %v930 = vld [vmem:[#allocation3 + $0x18] sm:$0xff]
        %v931 = vld [vmem:[#allocation3 + $0x20] sm:$0xff]
        %v932 = vld [vmem:[#allocation3 + $0x28] sm:$0xff]
        %v933 = vld [vmem:[#allocation3 + $0x30] sm:$0xff]
        %v934 = vld [vmem:[#allocation3 + $0x38] sm:$0xff]
        %v935 = vrcp.pop %v927
        %v936 = vrcp.pop %v928
        %v937 = vrcp.pop %v929
        %v938 = vrcp.pop %v930
        %v939 = vrcp.pop %v931
        %v940 = vrcp.pop %v932
        %v941 = vrcp.pop %v933
        %v942 = vrcp.pop %v934
        %v943 = vld [vmem:[#allocation4] sm:$0xff]
        %v944 = vld [vmem:[#allocation4 + $0x8] sm:$0xff]
        %v945 = vld [vmem:[#allocation4 + $0x10] sm:$0xff]
        %v946 = vld [vmem:[#allocation4 + $0x18] sm:$0xff]
        %v947 = vld [vmem:[#allocation4 + $0x20] sm:$0xff]
        %v948 = vld [vmem:[#allocation4 + $0x28] sm:$0xff]
        %v949 = vld [vmem:[#allocation4 + $0x30] sm:$0xff]
        %v950 = vld [vmem:[#allocation4 + $0x38] sm:$0xff]
        %952 = vset.pattern.permute.xlu0 0
        %953 = vperm.xlu0 %952, %v935
        %v954 = vpop.permute.xlu0 %953
        %957 = vset.pattern.permute.xlu0 0
        %958 = vperm.xlu0 %957, %v936
        %v959 = vpop.permute.xlu0 %958
        %962 = vset.pattern.permute.xlu0 0
        %963 = vperm.xlu0 %962, %v937
        %v964 = vpop.permute.xlu0 %963
        %967 = vset.pattern.permute.xlu0 0
        %968 = vperm.xlu0 %967, %v938
        %v969 = vpop.permute.xlu0 %968
        %972 = vset.pattern.permute.xlu0 0
        %973 = vperm.xlu0 %972, %v939
        %v974 = vpop.permute.xlu0 %973
        %977 = vset.pattern.permute.xlu0 0
        %978 = vperm.xlu0 %977, %v940
        %v979 = vpop.permute.xlu0 %978
        %982 = vset.pattern.permute.xlu0 0
        %983 = vperm.xlu0 %982, %v941
        %v984 = vpop.permute.xlu0 %983
        %987 = vset.pattern.permute.xlu0 0
        %988 = vperm.xlu0 %987, %v942
        %v989 = vpop.permute.xlu0 %988
        %v991 = vmul.f32 %v943, %v954
        %v992 = vmul.f32 %v944, %v959
        %v993 = vmul.f32 %v945, %v964
        %v994 = vmul.f32 %v946, %v969
        %v995 = vmul.f32 %v947, %v974
        %v996 = vmul.f32 %v948, %v979
        %v997 = vmul.f32 %v949, %v984
        %v998 = vmul.f32 %v950, %v989
        %999 = vst.msk [vmem:[%s287] sm:$0xff] %vm367, %v991
        %1000 = vst.msk [vmem:[%s287 + $0x8] sm:$0xff] %vm367, %v992
        %1001 = vst.msk [vmem:[%s287 + $0x10] sm:$0xff] %vm367, %v993
        %1002 = vst.msk [vmem:[%s287 + $0x18] sm:$0xff] %vm367, %v994
        %1003 = vst.msk [vmem:[%s287 + $0x20] sm:$0xff] %vm367, %v995
        %1004 = vst.msk [vmem:[%s287 + $0x28] sm:$0xff] %vm367, %v996
        %1005 = vst.msk [vmem:[%s287 + $0x30] sm:$0xff] %vm367, %v997
        %1006 = vst.msk [vmem:[%s287 + $0x38] sm:$0xff] %vm367, %v998
      $region40: #{tpu_custom_call.1} parent=31 // pred_fallthru
        _
      %s1007 = smul.u32 8, %s20
      %p1008 = scmp.lt.s32.totalorder %s19, 7
      %s1009 = scalar_select %p1008, %s19, 7
      %p1010 = scmp.lt.s32.totalorder %s1007, 7
      %s1011 = scalar_select %p1010, %s1007, 7
      %s1012 = smul.addr %s1009, 8
      %s1013 = sadd.s32 %s1011, %s1012
      %s1014 = smul.addr %s1013, 8
      %s1015 = scalar_lea.vmem %s3, %s1014
      // Predicated region
      $region41: #{tpu_custom_call.1} parent=31 // pred_check
        %p1016 = pneg %p137
      $region42: #{tpu_custom_call.1} parent=31 // pred_check_branch
        %1018 = sbr.rel (%p1016) target = $region44
      $region43: #{tpu_custom_call.1} parent=31 // pred_region
        %s1019 = smul.u32 8, %s20
      $region44: #{tpu_custom_call.1} parent=31 // pred_fallthru
        _
    $region32: #{tpu_custom_call.1} parent=5 // pred_fallthru
      _
    %p1020 = scmp.le.s32.totalorder 2, %s9
    // Predicated region
    $region45: #{tpu_custom_call.1} parent=5 // pred_check
      %p1021 = pneg %p1020
    $region46: #{tpu_custom_call.1} parent=5 // pred_check_branch
      %1023 = sbr.rel (%p1021) target = $region48
    $region47: #{tpu_custom_call.1} parent=5 // pred_region
      %s1024 = ssub.s32 %s9, 2
      // Predicated region
      $region49: #{tpu_custom_call.1} parent=47 // pred_check
        %p1025 = pneg %p143
      $region50: #{tpu_custom_call.1} parent=47 // pred_check_branch
        %1027 = sbr.rel (%p1025) target = $region52
      $region51: #{tpu_custom_call.1} parent=47 // pred_region
        %s1028 = smul.u32 8, %s23
        %p1029 = scmp.lt.s32.totalorder %s22, 7
        %s1030 = scalar_select %p1029, %s22, 7
        %p1031 = scmp.lt.s32.totalorder %s1028, 7
        %s1032 = scalar_select %p1031, %s1028, 7
        %s1033 = smul.addr %s1030, 8
        %s1034 = sadd.s32 %s1032, %s1033
        %s1035 = smul.addr %s1034, 8
        %s1036 = scalar_lea.vmem %s3, %s1035
      $region52: #{tpu_custom_call.1} parent=47 // pred_fallthru
        _
    $region48: #{tpu_custom_call.1} parent=5 // pred_fallthru
      _
  $region6: #{tpu_custom_call.1} parent=0 // loop_footer
    %s13 = sadd.s32 1, %s9
  $region7: #{tpu_custom_call.1} parent=0 // loop_footer_branch
    %8 = sbr.rel target = $region3
  $region8: #{tpu_custom_call.1} parent=0 // loop_exit
    _

</llo_original>
